<compile_context>
chip_gen: v5e
topology: v5e:2x2
jax: 0.10.0
libtpu: 0.0.40
codegen_flags: <defaults>
</compile_context>

<pallas_src>
import functools
import math

import jax
import jax.numpy as jnp
from jax.experimental import pallas as pl
from jax.experimental.pallas import tpu as pltpu


def _layernorm_kernel(x_ref, g_ref, b_ref, o_ref, *, eps, inv_d, inv_dm1,
                      approx_recip):
    # x_ref: (tile_rows, d_model); g_ref/b_ref: (1, d_model)
    xf = x_ref[...].astype(jnp.float32)

    # mean = sum(x) * (1/d)  (constant multiply instead of divide)
    mean = jnp.sum(xf, axis=-1, keepdims=True) * inv_d
    diff = xf - mean

    # Unbiased variance (Bessel, ddof=1) — matches torch.Tensor.std default.
    var = jnp.sum(diff * diff, axis=-1, keepdims=True) * inv_dm1

    # eps is added to std (outside the sqrt), matching the PyTorch module.
    inv = pl.reciprocal(jnp.sqrt(var) + eps, approx=approx_recip)

    gamma = g_ref[...].astype(jnp.float32)
    beta = b_ref[...].astype(jnp.float32)

    # Re-read x for the output expression rather than keeping `xf`/`diff` live
    # past the reductions — fewer full-tile f32 temps resident in VMEM.
    o_ref[...] = (
        gamma * ((x_ref[...].astype(jnp.float32) - mean) * inv) + beta
    ).astype(o_ref.dtype)


def _vmem_plan():
    """Returns (vmem_limit_bytes, tile_working_set_budget) per TPU generation."""
    mib = 1024 * 1024
    try:
        cap = int(pltpu.get_tpu_info().vmem_capacity_bytes)
    except Exception:
        cap = 64 * mib  # be conservative: assume the smallest (v7x-sized) VMEM
    if cap >= 100 * mib:                 # v5e / v6e: 128 MiB VMEM per core
        return 96 * mib, 60 * mib
    # v7x-class (64 MiB per core) or unknown-small
    limit = min(40 * mib, (cap * 5) // 8)
    budget = min(22 * mib, (cap * 11) // 32)
    return limit, budget


def _round_up(x, m):
    return ((x + m - 1) // m) * m


def layer_norm(x, gamma, beta, *, eps=1e-6, tile_rows=None, approx_recip=False):
    orig_shape = x.shape
    d_model = int(orig_shape[-1])
    rows = int(math.prod(orig_shape[:-1])) if len(orig_shape) > 1 else 1

    dtype_bytes = jnp.dtype(x.dtype).itemsize
    # Sublane packing: 8 rows/vreg for 32-bit, 16 for bf16, 32 for 8-bit.
    row_align = 8 * max(1, 4 // dtype_bytes)

    vmem_limit, budget = _vmem_plan()

    if tile_rows is None:
        # Per-row VMEM working-set bytes:
        #   2x input + 2x output tiles (double-buffered, native dtype)
        # + ~3 full-tile f32 intermediates materialized by the kernel body.
        per_row_bytes = d_model * (4 * dtype_bytes + 3 * 4)
        tile_rows = max(row_align,
                        (budget // per_row_bytes) // row_align * row_align)

        # Megacore: keep >= 2 (ideally 4) grid steps for non-trivial inputs so
        # "parallel" can shard the grid across v7x's two TensorCores.
        if rows >= 4 * row_align:
            min_steps = 4
        elif rows >= 2 * row_align:
            min_steps = 2
        else:
            min_steps = 1
        if min_steps > 1:
            tile_rows = min(tile_rows,
                            _round_up(pl.cdiv(rows, min_steps), row_align))

    if rows <= row_align:
        # Tiny input: full-extent block along rows (always a legal block shape).
        tile_rows = rows
    else:
        tile_rows = max(row_align, (tile_rows // row_align) * row_align)
        # Keep the block within the array; the ragged last block (if any) is
        # padded on read / masked on write by Pallas — rows are independent.
        tile_rows = min(tile_rows, (rows // row_align) * row_align)

    x2d = x.reshape(rows, d_model)
    g2d = gamma.reshape(1, d_model)
    b2d = beta.reshape(1, d_model)

    grid = (pl.cdiv(rows, tile_rows),)

    # d_model == 1: torch's x.std(-1) on a single element is 0/0 = NaN; fold
    # the Bessel factor to NaN instead of a trace-time ZeroDivisionError.
    inv_d = 1.0 / d_model
    inv_dm1 = (1.0 / (d_model - 1)) if d_model > 1 else float("nan")

    out = pl.pallas_call(
        functools.partial(
            _layernorm_kernel,
            eps=eps, inv_d=inv_d, inv_dm1=inv_dm1, approx_recip=approx_recip,
        ),
        out_shape=jax.ShapeDtypeStruct((rows, d_model), x.dtype),
        grid_spec=pltpu.PrefetchScalarGridSpec(
            num_scalar_prefetch=0,
            grid=grid,
            in_specs=[
                pl.BlockSpec((tile_rows, d_model), lambda i: (i, 0)),
                pl.BlockSpec((1, d_model), lambda i: (0, 0)),
                pl.BlockSpec((1, d_model), lambda i: (0, 0)),
            ],
            out_specs=pl.BlockSpec((tile_rows, d_model), lambda i: (i, 0)),
        ),
        compiler_params=pltpu.CompilerParams(
            dimension_semantics=("parallel",),
            vmem_limit_bytes=vmem_limit,
        ),
    )(x2d, g2d, b2d)

    return out.reshape(orig_shape)


def _reference(x, gamma, beta, eps):
    d = x.shape[-1]
    mean = x.mean(-1, keepdims=True)
    std = jnp.sqrt(jnp.sum((x - mean) ** 2, axis=-1, keepdims=True) / (d - 1))
    return gamma * (x - mean) / (std + eps) + beta


if __name__ == "__main__":
    key = jax.random.PRNGKey(0)

    # Lane-dense small demo: batch=2, seq=8, d_model=128.
    batch, seq, d_model = 2, 8, 128
    x = jax.random.normal(key, (batch, seq, d_model), dtype=jnp.float32)
    gamma = jnp.ones((d_model,), dtype=jnp.float32)   # nn.Parameter(torch.ones)
    beta = jnp.zeros((d_model,), dtype=jnp.float32)   # nn.Parameter(torch.zeros)

    out = layer_norm(x, gamma, beta, eps=1e-6)
    out = jax.block_until_ready(out)
    ref = _reference(x, gamma, beta, 1e-6)
    assert jnp.allclose(out, ref, atol=1e-5, rtol=1e-5), "mismatch vs reference"

    # Ragged-grid check (rows not a multiple of tile_rows): exercises the
    # no-pad path with a masked last block.
    x2 = jax.random.normal(jax.random.PRNGKey(1), (2, 9, d_model), dtype=jnp.float32)
    out2 = layer_norm(x2, gamma, beta, eps=1e-6, tile_rows=8)
    out2 = jax.block_until_ready(out2)
    ref2 = _reference(x2, gamma, beta, 1e-6)
    assert jnp.allclose(out2, ref2, atol=1e-5, rtol=1e-5), "ragged-grid mismatch"

    # Auto-tiling path (no explicit tile_rows) on a slightly taller input:
    # exercises the min-steps / budget-derived tile logic.
    x3 = jax.random.normal(jax.random.PRNGKey(2), (4, 24, d_model), dtype=jnp.float32)
    out3 = jax.block_until_ready(layer_norm(x3, gamma, beta, eps=1e-6))
    ref3 = _reference(x3, gamma, beta, 1e-6)
    assert jnp.allclose(out3, ref3, atol=1e-5, rtol=1e-5), "auto-tile mismatch"

    print("KERNEL_OK")
</pallas_src>

<mosaic_0001>
module attributes {stable_mosaic.version = 11 : i64} {
  func.func @_layernorm_kernel(%arg0: i32, %arg1: memref<8x128xf32, #tpu.memory_space<vmem>>, %arg2: memref<1x128xf32, #tpu.memory_space<vmem>>, %arg3: memref<1x128xf32, #tpu.memory_space<vmem>>, %arg4: memref<8x128xf32, #tpu.memory_space<vmem>>) attributes {dimension_semantics = [#tpu.dimension_semantics<parallel>], iteration_bounds = array<i64: 2>, scalar_prefetch = 0 : i64, scratch_operands = 0 : i64, tpu.core_type = #tpu.core_type<tc>, window_params = [{transform_indices = @transform_0, window_bounds = array<i64: 8, 128>}, {pipeline_mode = #tpu.pipeline_mode<synchronous>, transform_indices = @transform_1, window_bounds = array<i64: 1, 128>}, {pipeline_mode = #tpu.pipeline_mode<synchronous>, transform_indices = @transform_2, window_bounds = array<i64: 1, 128>}, {transform_indices = @transform_3, window_bounds = array<i64: 8, 128>}]} {
    %c0 = arith.constant 0 : index
    %c0_0 = arith.constant 0 : index
    %0 = vector.load %arg1[%c0, %c0_0] : memref<8x128xf32, #tpu.memory_space<vmem>>, vector<8x128xf32>
    %cst = arith.constant dense<0.000000e+00> : vector<8xf32>
    %1 = vector.multi_reduction <add>, %0, %cst [1] : vector<8x128xf32> to vector<8xf32>
    %2 = vector.shape_cast %1 : vector<8xf32> to vector<8x1xf32>
    %cst_1 = arith.constant 7.812500e-03 : f32
    %3 = vector.broadcast %cst_1 : f32 to vector<8x1xf32>
    %4 = arith.mulf %2, %3 : vector<8x1xf32>
    %5 = vector.broadcast %4 : vector<8x1xf32> to vector<8x128xf32>
    %6 = arith.subf %0, %5 : vector<8x128xf32>
    %7 = arith.mulf %6, %6 : vector<8x128xf32>
    %cst_2 = arith.constant dense<0.000000e+00> : vector<8xf32>
    %8 = vector.multi_reduction <add>, %7, %cst_2 [1] : vector<8x128xf32> to vector<8xf32>
    %9 = vector.shape_cast %8 : vector<8xf32> to vector<8x1xf32>
    %cst_3 = arith.constant 0.00787401571 : f32
    %10 = vector.broadcast %cst_3 : f32 to vector<8x1xf32>
    %11 = arith.mulf %9, %10 : vector<8x1xf32>
    %12 = math.sqrt %11 : vector<8x1xf32>
    %cst_4 = arith.constant 9.99999997E-7 : f32
    %13 = vector.broadcast %cst_4 : f32 to vector<8x1xf32>
    %14 = arith.addf %12, %13 : vector<8x1xf32>
    %15 = tpu.reciprocal %14 : vector<8x1xf32> -> vector<8x1xf32>
    %c0_5 = arith.constant 0 : index
    %c0_6 = arith.constant 0 : index
    %16 = vector.load %arg2[%c0_5, %c0_6] : memref<1x128xf32, #tpu.memory_space<vmem>>, vector<1x128xf32>
    %c0_7 = arith.constant 0 : index
    %c0_8 = arith.constant 0 : index
    %17 = vector.load %arg3[%c0_7, %c0_8] : memref<1x128xf32, #tpu.memory_space<vmem>>, vector<1x128xf32>
    %c0_9 = arith.constant 0 : index
    %c0_10 = arith.constant 0 : index
    %18 = vector.load %arg1[%c0_9, %c0_10] : memref<8x128xf32, #tpu.memory_space<vmem>>, vector<8x128xf32>
    %19 = vector.broadcast %4 : vector<8x1xf32> to vector<8x128xf32>
    %20 = arith.subf %18, %19 : vector<8x128xf32>
    %21 = vector.broadcast %15 : vector<8x1xf32> to vector<8x128xf32>
    %22 = arith.mulf %20, %21 : vector<8x128xf32>
    %23 = vector.broadcast %16 : vector<1x128xf32> to vector<8x128xf32>
    %24 = arith.mulf %23, %22 : vector<8x128xf32>
    %25 = vector.broadcast %17 : vector<1x128xf32> to vector<8x128xf32>
    %26 = arith.addf %24, %25 : vector<8x128xf32>
    %c0_11 = arith.constant 0 : index
    %c0_12 = arith.constant 0 : index
    %27 = vector.load %arg4[%c0_11, %c0_12] : memref<8x128xf32, #tpu.memory_space<vmem>>, vector<8x128xf32>
    tpu.vector_store %arg4[%c0_11, %c0_12], %26 {strides = array<i32>} : memref<8x128xf32, #tpu.memory_space<vmem>>, vector<8x128xf32>,
    return
  }
  func.func @transform_0(%arg0: i32) -> (i32, i32) {
    %c0_i32 = arith.constant 0 : i32
    %c0_i32_0 = arith.constant 0 : i32
    return %arg0, %c0_i32 : i32, i32
  }
  func.func @transform_1(%arg0: i32) -> (i32, i32) {
    %c0_i32 = arith.constant 0 : i32
    %c0_i32_0 = arith.constant 0 : i32
    %c0_i32_1 = arith.constant 0 : i32
    return %c0_i32, %c0_i32_0 : i32, i32
  }
  func.func @transform_2(%arg0: i32) -> (i32, i32) {
    %c0_i32 = arith.constant 0 : i32
    %c0_i32_0 = arith.constant 0 : i32
    %c0_i32_1 = arith.constant 0 : i32
    return %c0_i32, %c0_i32_0 : i32, i32
  }
  func.func @transform_3(%arg0: i32) -> (i32, i32) {
    %c0_i32 = arith.constant 0 : i32
    %c0_i32_0 = arith.constant 0 : i32
    return %arg0, %c0_i32 : i32, i32
  }
}

</mosaic_0001>

<llo_original>
// kernel: tpu_custom_call.1
$region0: #{tpu_custom_call.1}
  #allocation0 [shape = 'u32[]', space=smem, size = 0x4, offset = 0x4, fixed_abs, tag = 'smem constant byte address 0x4 - core index']
  #allocation1 [shape = 'u32[72,128]{1,0:T(1,128)}', space=vmem, size = 0x9000, scoped, tag = 'internal scratch']
  %s0 = inlined_call_operand.hbm [shape: f32[16,128], index: 0, kind: input, shape index: {}]
  %s1 = inlined_call_operand.hbm [shape: f32[1,128], index: 1, kind: input, shape index: {}]
  %s2 = inlined_call_operand.vmem [shape: f32[1,128], index: 2, kind: input, shape index: {}]
  %s3 = inlined_call_operand.hbm [shape: f32[16,128], index: 3, kind: output, shape index: {}]
  %s4 = sld [smem:[#allocation0]]
  $region53: #{tpu_custom_call.1} parent=0
    _
  %s6 = ssub.s32 1, %s4
  %s7 = scalar_select 0, %s6, %s4
  $region1: #{tpu_custom_call.1} parent=0
    #allocation2 [shape = 'u8[8192]{0}', space=vmem, size = 0x2000, scoped, tag = 'input window, operand 0']
    #allocation3 [shape = 's32[2]{0}', space=sflag, size = 0x8, scoped, tag = 'scoped memory for tpu_custom_call.1']
    #allocation4 [shape = 's32[2]{0}', space=sflag, size = 0x8, scoped, tag = 'scoped memory for tpu_custom_call.1']
    #allocation5 [shape = 'u8[512]{0}', space=vmem, size = 0x400, scoped, tag = 'input window, operand 1, single buffered']
    #allocation6 [shape = 's32[1]{0}', space=sflag, size = 0x4, scoped, tag = 'scoped memory for tpu_custom_call.1']
    #allocation7 [shape = 'u8[8192]{0}', space=vmem, size = 0x2000, scoped, tag = 'output window, operand 0']
    %8 = vsyncpa [#allocation3], 0
    %s9 = scalar_lea.sflag [#allocation3], 1
    %10 = vsyncpa %s9, 0
    %11 = vsyncpa [#allocation6], 0
    %12 = vsyncpa [#allocation4], 0
    %s13 = scalar_lea.sflag [#allocation4], 1
    %14 = vsyncpa %s13, 0
    loop: start=0, step=1, limit=4
    $region2: #{tpu_custom_call.1} parent=1 // loop_pre_header
      _
    $region3: #{tpu_custom_call.1} parent=1 // loop_header
      %s16 = sphi 0, %s20
      %p17 = scmp.ge.s32.totalorder %s16, 4
      %s26 = sphi 0, %s28
      %s29 = sphi 0, %s26
      %s30 = sphi 0, %s29
      %s46 = sphi 0, %s30
      %s50 = sphi 0, %s50
      %s52 = sphi 0, %s50
      %s53 = sphi 0, %s52
      %s67 = sphi 0, %s53
      %s71 = sphi 0, %s71
      %s73 = sphi 0, %s71
      %s74 = sphi 0, %s73
      %s88 = sphi 0, %s74
      %s94 = sphi 0, %s96
      %s97 = sphi 0, %s94
      %s98 = sphi 0, %s97
      %s114 = sphi 0, %s98
    $region4: #{tpu_custom_call.1} parent=1 // loop_header_branch
      %19 = sbr.rel (%p17) target = $region8
    $region5: #{tpu_custom_call.1} parent=1 // loop_body
      %s21 = ssub.s32 %s16, 1
      %s22 = ssub.s32 %s16, 2
      %s23 = sadd.s32 %s16, 1
      %s24 = ssub.s32 %s16, %s23
      %p25 = scmp.eq.s32.totalorder %s24, 0
      %s27 = sadd.s32 %s26, 1
      %s28 = scalar_select %p25, %s26, %s27
      %p31 = pneg %p25
      %p32 = scmp.eq.s32.totalorder %s16, 1
      %p33 = por %p31, %p32
      %p34 = scmp.ne.s32.totalorder %s26, %s29
      %p35 = scmp.eq.s32.totalorder %s16, 0
      %p36 = por %p34, %p35
      %p37 = scmp.ne.s32.totalorder %s26, %s29
      %p38 = scmp.eq.s32.totalorder %s21, 1
      %p39 = por %p37, %p38
      %p40 = scmp.ne.s32.totalorder %s29, %s30
      %p41 = scmp.eq.s32.totalorder %s21, 0
      %p42 = por %p40, %p41
      %p43 = scmp.ne.s32.totalorder %s29, %s30
      %p44 = scmp.eq.s32.totalorder %s22, 1
      %p45 = por %p43, %p44
      %p47 = scmp.ne.s32.totalorder %s30, %s46
      %p48 = scmp.eq.s32.totalorder %s22, 0
      %p49 = por %p47, %p48
      %s51 = sadd.s32 %s50, 1
      %p54 = scmp.eq.s32.totalorder %s16, 1
      %p55 = scmp.ne.s32.totalorder %s50, %s52
      %p56 = scmp.eq.s32.totalorder %s16, 0
      %p57 = por %p55, %p56
      %p58 = scmp.ne.s32.totalorder %s50, %s52
      %p59 = scmp.eq.s32.totalorder %s21, 1
      %p60 = por %p58, %p59
      %p61 = scmp.ne.s32.totalorder %s52, %s53
      %p62 = scmp.eq.s32.totalorder %s21, 0
      %p63 = por %p61, %p62
      %p64 = scmp.ne.s32.totalorder %s52, %s53
      %p65 = scmp.eq.s32.totalorder %s22, 1
      %p66 = por %p64, %p65
      %p68 = scmp.ne.s32.totalorder %s53, %s67
      %p69 = scmp.eq.s32.totalorder %s22, 0
      %p70 = por %p68, %p69
      %s72 = sadd.s32 %s71, 1
      %p75 = scmp.eq.s32.totalorder %s16, 1
      %p76 = scmp.ne.s32.totalorder %s71, %s73
      %p77 = scmp.eq.s32.totalorder %s16, 0
      %p78 = por %p76, %p77
      %p79 = scmp.ne.s32.totalorder %s71, %s73
      %p80 = scmp.eq.s32.totalorder %s21, 1
      %p81 = por %p79, %p80
      %p82 = scmp.ne.s32.totalorder %s73, %s74
      %p83 = scmp.eq.s32.totalorder %s21, 0
      %p84 = por %p82, %p83
      %p85 = scmp.ne.s32.totalorder %s73, %s74
      %p86 = scmp.eq.s32.totalorder %s22, 1
      %p87 = por %p85, %p86
      %p89 = scmp.ne.s32.totalorder %s74, %s88
      %p90 = scmp.eq.s32.totalorder %s22, 0
      %p91 = por %p89, %p90
      %s92 = ssub.s32 %s16, %s23
      %p93 = scmp.eq.s32.totalorder %s92, 0
      %s95 = sadd.s32 %s94, 1
      %s96 = scalar_select %p93, %s94, %s95
      %p99 = pneg %p93
      %p100 = scmp.eq.s32.totalorder %s16, 1
      %p101 = por %p99, %p100
      %p102 = scmp.ne.s32.totalorder %s94, %s97
      %p103 = scmp.eq.s32.totalorder %s16, 0
      %p104 = por %p102, %p103
      %p105 = scmp.ne.s32.totalorder %s94, %s97
      %p106 = scmp.eq.s32.totalorder %s21, 1
      %p107 = por %p105, %p106
      %p108 = scmp.ne.s32.totalorder %s97, %s98
      %p109 = scmp.eq.s32.totalorder %s21, 0
      %p110 = por %p108, %p109
      %p111 = scmp.ne.s32.totalorder %s97, %s98
      %p112 = scmp.eq.s32.totalorder %s22, 1
      %p113 = por %p111, %p112
      %p115 = scmp.ne.s32.totalorder %s98, %s114
      %p116 = scmp.eq.s32.totalorder %s22, 0
      %p117 = por %p115, %p116
      %p118 = scmp.le.s32.totalorder 1, %s16
      %p119 = scmp.lt.s32.totalorder %s16, 3
      %p120 = pnand %p118, %p119
      %p121 = pneg %p120
      // Predicated region
      $region9: #{tpu_custom_call.1} parent=5 // pred_check
        _
      $region10: #{tpu_custom_call.1} parent=5 // pred_check_branch
        %123 = sbr.rel (%p120) target = $region12
      $region11: #{tpu_custom_call.1} parent=5 // pred_region
        %s124 = ssub.s32 %s16, 1
        // Predicated region
        $region13: #{tpu_custom_call.1} parent=11 // pred_check
          %p125 = pneg %p63
        $region14: #{tpu_custom_call.1} parent=11 // pred_check_branch
          %127 = sbr.rel (%p125) target = $region16
        $region15: #{tpu_custom_call.1} parent=11 // pred_region
          %129 = vsyncadd [#allocation6], 0
          %s131 = sshll.u32 %s1, 4
          %s132 = int_to_ptr.hbm [resolvable:$true] %s131
          %s133 = sshll.u32 [#allocation5], 4
          %s134 = int_to_ptr.vmem [resolvable:$true] %s133
          %136 = dma.hbm_to_vmem [thread:$0]  %s132, 16, %s134, [#allocation6]
        $region16: #{tpu_custom_call.1} parent=11 // pred_fallthru
          _
        // Predicated region
        $region17: #{tpu_custom_call.1} parent=11 // pred_check
          %p137 = pneg %p84
        $region18: #{tpu_custom_call.1} parent=11 // pred_check_branch
          %139 = sbr.rel (%p137) target = $region20
        $region19: #{tpu_custom_call.1} parent=11 // pred_region
          _
        $region20: #{tpu_custom_call.1} parent=11 // pred_fallthru
          _
      $region12: #{tpu_custom_call.1} parent=5 // pred_fallthru
        _
      %p140 = scmp.lt.s32.totalorder %s16, 2
      // Predicated region
      $region21: #{tpu_custom_call.1} parent=5 // pred_check
        %p141 = pneg %p140
      $region22: #{tpu_custom_call.1} parent=5 // pred_check_branch
        %143 = sbr.rel (%p141) target = $region24
      $region23: #{tpu_custom_call.1} parent=5 // pred_region
        // Predicated region
        $region25: #{tpu_custom_call.1} parent=23 // pred_check
          %p144 = pneg %p36
        $region26: #{tpu_custom_call.1} parent=23 // pred_check_branch
          %146 = sbr.rel (%p144) target = $region28
        $region27: #{tpu_custom_call.1} parent=23 // pred_region
          %s147 = sand.u32 %s26, 1
          %s148 = scalar_lea.sflag [#allocation3], %s147
          %s149 = sand.u32 %s26, 1
          %s150 = smul.addr %s149, 8
          %s151 = scalar_lea.vmem [#allocation2], %s150
          %153 = vsyncadd %s148, 0
          %s154 = smul.addr %s16, 8
          %s155 = scalar_lea.hbm %s0, %s154
          %s157 = sshll.u32 %s155, 4
          %s158 = int_to_ptr.hbm [resolvable:$true] %s157
          %s159 = sshll.u32 %s151, 4
          %s160 = int_to_ptr.vmem [resolvable:$true] %s159
          %162 = dma.hbm_to_vmem [thread:$0]  %s158, 128, %s160, %s148
        $region28: #{tpu_custom_call.1} parent=23 // pred_fallthru
          _
      $region24: #{tpu_custom_call.1} parent=5 // pred_fallthru
        _
      %p163 = scmp.le.s32.totalorder 1, %s16
      %p164 = scmp.lt.s32.totalorder %s16, 3
      %p165 = pnand %p163, %p164
      %p166 = pneg %p165
      // Predicated region
      $region29: #{tpu_custom_call.1} parent=5 // pred_check
        _
      $region30: #{tpu_custom_call.1} parent=5 // pred_check_branch
        %168 = sbr.rel (%p165) target = $region32
      $region31: #{tpu_custom_call.1} parent=5 // pred_region
        %s169 = ssub.s32 %s16, 1
        %s170 = sand.u32 %s29, 1
        %s171 = scalar_lea.sflag [#allocation3], %s170
        %s172 = sand.u32 %s29, 1
        %s173 = smul.addr %s172, 8
        %s174 = scalar_lea.vmem [#allocation2], %s173
        // Predicated region
        $region33: #{tpu_custom_call.1} parent=31 // pred_check
          %p175 = pneg %p42
        $region34: #{tpu_custom_call.1} parent=31 // pred_check_branch
          %177 = sbr.rel (%p175) target = $region36
        $region35: #{tpu_custom_call.1} parent=31 // pred_region
          %179 = dma.done %s171, 128
        $region36: #{tpu_custom_call.1} parent=31 // pred_fallthru
          _
        // Predicated region
        $region37: #{tpu_custom_call.1} parent=31 // pred_check
          %p180 = pneg %p63
        $region38: #{tpu_custom_call.1} parent=31 // pred_check_branch
          %182 = sbr.rel (%p180) target = $region40
        $region39: #{tpu_custom_call.1} parent=31 // pred_region
          %184 = dma.done [#allocation6], 16
        $region40: #{tpu_custom_call.1} parent=31 // pred_fallthru
          _
        %s185 = sand.u32 %s29, 1
        %s186 = scalar_lea.sflag [#allocation3], %s185
        %s187 = sand.u32 %s29, 1
        %s188 = smul.addr %s187, 8
        %s189 = scalar_lea.vmem [#allocation2], %s188
        %p190 = pneg %p42
        %p191 = pneg %p39
        %p192 = pneg %p63
        %p193 = pneg %p60
        %p194 = pneg %p84
        %p195 = pneg %p81
        %p196 = pneg %p110
        %p197 = pneg %p107
        %s198 = sand.u32 %s97, 1
        %s199 = scalar_lea.sflag [#allocation4], %s198
        %s200 = sand.u32 %s97, 1
        %s201 = smul.addr %s200, 8
        %s202 = scalar_lea.vmem [#allocation7], %s201
        %v203 = vld [vmem:[%s174] sm:$0xff]
        %204 = vadd.xlane.f32.xlu0 %v203
        %v205 = vpop.xlane.xlu0 %204
        %v206 = vmul.f32 %v205, 0.0078125
        %v207 = vsub.f32 %v203, %v206
        %v208 = vmul.f32 %v207, %v207
        %209 = vadd.xlane.f32.xlu0 %v208
        %v210 = vpop.xlane.xlu0 %209
        %v211 = vmul.f32 %v210, 0.007874016
        %v212 = vrsqrt.pop %v211
        %v213 = vmul.f32 %v212, %v211
        %v214 = vmul.f32 %v213, %v212
        %v215 = vmul.f32 0.5, %v214
        %v216 = vsub.f32 1.5, %v215
        %v217 = vmul.f32 %v212, %v216
        %v218 = vmul.f32 %v211, %v217
        %vm219 = vcmp.eq.f32.partialorder %v211, inf
        %v220 = vsel %vm219, %v211, %v218
        %vm221 = vcmp.eq.f32.partialorder %v211, 0.0
        %v222 = vand.u32 %v211, 2147483648
        %v223 = vsel %vm221, %v222, %v220
        %v224 = vadd.f32 %v223, 1e-06
        %v225 = vrcp.pop %v224
        %v226 = vmul.f32 %v224, %v225
        %v227 = vsub.f32 1.0, %v226
        %v228 = vmul.f32 %v225, %v227
        %v229 = vadd.f32 %v225, %v228
        %vm230 = vweird.f32 %v224
        %vm231 = vweird.f32 %v225
        %vm232 = vmor %vm230, %vm231
        %v233 = vsel %vm232, %v225, %v229
        %v234 = vand.u32 2147483647, %v224
        %vm235 = vcmp.eq.f32.partialorder %v234, 8.507059e+37
        %v236 = vand.u32 %v224, 2147483648
        %v237 = vor.u32 1.1754944e-38, %v236
        %v238 = vsel %vm235, %v237, %v233
        %v239 = vld [vmem:[#allocation5] sm:$0x1]
        %v240 = vld [vmem:[%s2] sm:$0x1]
        %v241 = vmul.f32 %v207, %v238
        %v243 = vperm.slane %v239, 0
        %v245 = vmul.f32 %v243, %v241
        %v247 = vperm.slane %v240, 0
        %v249 = vadd.f32 %v245, %v247
        %250 = vst [vmem:[%s202] sm:$0xff] %v249
        %s251 = sand.u32 %s97, 1
        %s252 = scalar_lea.sflag [#allocation4], %s251
        %s253 = sand.u32 %s97, 1
        %s254 = smul.addr %s253, 8
        %s255 = scalar_lea.vmem [#allocation7], %s254
        // Predicated region
        $region41: #{tpu_custom_call.1} parent=31 // pred_check
          %p256 = pneg %p107
        $region42: #{tpu_custom_call.1} parent=31 // pred_check_branch
          %258 = sbr.rel (%p256) target = $region44
        $region43: #{tpu_custom_call.1} parent=31 // pred_region
          %260 = vsyncadd %s252, 0
          %s261 = smul.addr %s21, 8
          %s262 = scalar_lea.hbm %s3, %s261
          %s264 = sshll.u32 %s255, 4
          %s265 = int_to_ptr.vmem [resolvable:$true] %s264
          %s266 = sshll.u32 %s262, 4
          %s267 = int_to_ptr.hbm [resolvable:$true] %s266
          %269 = dma.vmem_to_hbm [thread:$0]  %s265, 128, %s267, %s252
        $region44: #{tpu_custom_call.1} parent=31 // pred_fallthru
          _
      $region32: #{tpu_custom_call.1} parent=5 // pred_fallthru
        _
      %p270 = scmp.le.s32.totalorder 2, %s16
      // Predicated region
      $region45: #{tpu_custom_call.1} parent=5 // pred_check
        %p271 = pneg %p270
      $region46: #{tpu_custom_call.1} parent=5 // pred_check_branch
        %273 = sbr.rel (%p271) target = $region48
      $region47: #{tpu_custom_call.1} parent=5 // pred_region
        %s274 = ssub.s32 %s16, 2
        // Predicated region
        $region49: #{tpu_custom_call.1} parent=47 // pred_check
          %p275 = pneg %p113
        $region50: #{tpu_custom_call.1} parent=47 // pred_check_branch
          %277 = sbr.rel (%p275) target = $region52
        $region51: #{tpu_custom_call.1} parent=47 // pred_region
          %s278 = sand.u32 %s98, 1
          %s279 = scalar_lea.sflag [#allocation4], %s278
          %s280 = sand.u32 %s98, 1
          %s281 = smul.addr %s280, 8
          %s282 = scalar_lea.vmem [#allocation7], %s281
          %284 = dma.done %s279, 128
        $region52: #{tpu_custom_call.1} parent=47 // pred_fallthru
          _
      $region48: #{tpu_custom_call.1} parent=5 // pred_fallthru
        _
    $region6: #{tpu_custom_call.1} parent=1 // loop_footer
      %s20 = sadd.s32 1, %s16
    $region7: #{tpu_custom_call.1} parent=1 // loop_footer_branch
      %15 = sbr.rel target = $region3
    $region8: #{tpu_custom_call.1} parent=1 // loop_exit
      _
    %285 = vsyncpa [#allocation3], 1
    %s286 = scalar_lea.sflag [#allocation3], 1
    %287 = vsyncpa %s286, 1
    %288 = vsyncpa [#allocation6], 1
    %289 = vsyncpa [#allocation4], 1
    %s290 = scalar_lea.sflag [#allocation4], 1
    %291 = vsyncpa %s290, 1

</llo_original>
